<compile_context>
chip_gen: v7x
topology: tpu7x:2x2x1
jax: 0.10.0
libtpu: 0.0.40
codegen_flags: <defaults>
</compile_context>

<pallas_src>
import math
from functools import partial

import jax
import jax.numpy as jnp
from jax import lax
from jax.experimental import pallas as pl
from jax.experimental.pallas import tpu as pltpu


def _attn_pool_kernel(h_ref, wqkv_ref, bqkv_ref, wc_ref, bc_ref,
                      mask_hc_ref, mask_ch_ref, o_ref, *, inv_sqrt_ch):
    """One batch element: qkv_proj -> single-query attention -> c_proj."""
    h = h_ref[0]                                   # (C, T), input dtype
    C, T = h.shape

    # ---- qkv projection (1x1 conv): (3C, C) @ (C, T), f32 accumulation ------
    qkv = lax.dot_general(
        wqkv_ref[...], h,
        dimension_numbers=(((1,), (0,)), ((), ())),
        preferred_element_type=jnp.float32,
    ) + bqkv_ref[...]                              # (3C, T) f32, bias broadcast
    qkv = qkv.astype(h.dtype)

    q = qkv[0 * C:1 * C]                           # (C, T)
    k = qkv[1 * C:2 * C]                           # (C, T)
    v = qkv[2 * C:3 * C]                           # (C, T)

    # ---- attention restricted to the pooled query (token 0) -----------------
    # Only x[:, :, 0] survives AttentionPool2d's final slice, so only the
    # query at t=0 contributes to the output: one softmax row per head.
    q0 = q[:, 0:1]                                 # (C, 1)
    prod = q0 * k                                  # (C, T), input dtype (VPU)

    # Per-head channel reduction via an exact 0/1 head mask on the MXU:
    #   logits[h, s] = (1/sqrt(ch)) * sum_{c in head h} q[c, 0] * k[c, s]
    logits = lax.dot_general(
        mask_hc_ref[...], prod,
        dimension_numbers=(((1,), (0,)), ((), ())),
        preferred_element_type=jnp.float32,
    ) * inv_sqrt_ch                                # (H, T) f32

    m = jnp.max(logits, axis=-1, keepdims=True)
    e = jnp.exp(logits - m)
    denom = jnp.sum(e, axis=-1, keepdims=True)
    probs = (e * pl.reciprocal(denom, approx=True)).astype(h.dtype)   # (H, T)

    # Broadcast per-head probabilities back to channels (exact 0/1 matmul):
    #   probs_c[c, s] = probs[head(c), s]
    probs_c = lax.dot_general(
        mask_ch_ref[...], probs,
        dimension_numbers=(((1,), (0,)), ((), ())),
        preferred_element_type=jnp.float32,
    ).astype(h.dtype)                              # (C, T)

    pv = probs_c * v                               # (C, T), input dtype

    # ---- fused attention-value contraction + c_proj --------------------------
    #   out[o] = sum_s sum_c wc[o, c] * probs[head(c), s] * v[c, s] + bc[o]
    mo = lax.dot_general(
        wc_ref[...], pv,
        dimension_numbers=(((1,), (0,)), ((), ())),
        preferred_element_type=jnp.float32,
    )                                              # (Cout, T) f32
    out = jnp.sum(mo, axis=-1, keepdims=True) + bc_ref[...]   # (Cout, 1) f32

    o_ref[0] = out.astype(o_ref.dtype)


def attention_pool_2d(x, pos_emb, w_qkv, b_qkv, w_c, b_c, n_heads):
    """Pallas equivalent of AttentionPool2d.forward.

    x:       [B, C, H, W]
    pos_emb: [C, H*W + 1]
    w_qkv:   [3C, C], b_qkv: [3C]   (1x1 conv weights, kernel dim squeezed)
    w_c:     [Cout, C], b_c: [Cout]
    returns: [B, Cout]   (== module output x[:, :, 0])
    """
    B, C = x.shape[:2]
    x_flat = x.reshape(B, C, -1)
    S = x_flat.shape[-1]
    T = S + 1
    Cout = w_c.shape[0]
    assert C % n_heads == 0
    ch = C // n_heads

    # Token assembly (cheap elementwise glue): mean token + positional emb.
    h = jnp.concatenate([jnp.mean(x_flat, axis=-1, keepdims=True), x_flat], axis=-1)
    h = h + pos_emb[None].astype(h.dtype)          # (B, C, T)

    # Exact 0/1 head-selection masks (avoid in-kernel reshapes/transposes).
    heads = jnp.arange(n_heads, dtype=jnp.int32)
    chan_head = jnp.arange(C, dtype=jnp.int32) // ch
    mask_hc = (heads[:, None] == chan_head[None, :]).astype(h.dtype)   # (H, C)
    mask_ch = (chan_head[:, None] == heads[None, :]).astype(h.dtype)   # (C, H)

    wqkv = w_qkv.reshape(3 * C, C).astype(h.dtype)
    bqkv = b_qkv.reshape(3 * C, 1).astype(jnp.float32)
    wc = w_c.reshape(Cout, C).astype(h.dtype)
    bc = b_c.reshape(Cout, 1).astype(jnp.float32)

    dsize = jnp.dtype(h.dtype).itemsize
    flops_per_b = (
        2 * (3 * C) * C * T        # qkv projection
        + C * T                    # q0 * k
        + 2 * n_heads * C * T      # per-head logit reduction (mask matmul)
        + 6 * n_heads * T          # softmax
        + 2 * C * n_heads * T      # head -> channel prob broadcast (mask matmul)
        + C * T                    # probs * v
        + 2 * Cout * C * T         # fused AV + c_proj matmul
        + Cout * T                 # final lane reduction
    )
    cost = pl.CostEstimate(
        flops=B * flops_per_b,
        transcendentals=B * n_heads * T,
        bytes_accessed=(h.size + wqkv.size + wc.size + mask_hc.size + mask_ch.size) * dsize
        + (bqkv.size + bc.size) * 4 + B * Cout * dsize,
    )

    out = pl.pallas_call(
        partial(_attn_pool_kernel, inv_sqrt_ch=1.0 / math.sqrt(ch)),
        out_shape=jax.ShapeDtypeStruct((B, Cout, 1), x.dtype),
        grid_spec=pltpu.PrefetchScalarGridSpec(
            num_scalar_prefetch=0,
            grid=(B,),
            in_specs=[
                pl.BlockSpec((1, C, T), lambda b: (b, 0, 0)),        # h
                pl.BlockSpec((3 * C, C), lambda b: (0, 0)),          # w_qkv
                pl.BlockSpec((3 * C, 1), lambda b: (0, 0)),          # b_qkv
                pl.BlockSpec((Cout, C), lambda b: (0, 0)),           # w_c
                pl.BlockSpec((Cout, 1), lambda b: (0, 0)),           # b_c
                pl.BlockSpec((n_heads, C), lambda b: (0, 0)),        # mask_hc
                pl.BlockSpec((C, n_heads), lambda b: (0, 0)),        # mask_ch
            ],
            out_specs=pl.BlockSpec((1, Cout, 1), lambda b: (b, 0, 0)),
        ),
        compiler_params=pltpu.CompilerParams(
            dimension_semantics=("parallel",),        # grid >= 2 -> megacore on v7x
            vmem_limit_bytes=32 * 1024 * 1024,
        ),
        cost_estimate=cost,
    )(h, wqkv, bqkv, wc, bc, mask_hc, mask_ch)

    return out.reshape(B, Cout)


def _reference_attention_pool(x, pos_emb, w_qkv, b_qkv, w_c, b_c, n_heads):
    """Pure-JAX reference mirroring the PyTorch AttentionPool2d forward."""
    b, c = x.shape[:2]
    x = x.reshape(b, c, -1)
    x = jnp.concatenate([jnp.mean(x, axis=-1, keepdims=True), x], axis=-1)
    x = x + pos_emb[None].astype(x.dtype)
    qkv = jnp.einsum("oc,bct->bot", w_qkv, x) + b_qkv[None, :, None]
    bs, width, length = qkv.shape
    ch = width // (3 * n_heads)
    q, k, v = jnp.split(qkv, 3, axis=1)
    scale = 1.0 / math.sqrt(math.sqrt(ch))
    q = (q * scale).reshape(bs * n_heads, ch, length)
    k = (k * scale).reshape(bs * n_heads, ch, length)
    v = v.reshape(bs * n_heads, ch, length)
    w = jnp.einsum("bct,bcs->bts", q, k)
    w = jax.nn.softmax(w.astype(jnp.float32), axis=-1).astype(w.dtype)
    a = jnp.einsum("bts,bcs->bct", w, v).reshape(bs, -1, length)
    out = jnp.einsum("oc,bct->bot", w_c, a) + b_c[None, :, None]
    return out[:, :, 0]


if __name__ == "__main__":
    # Small, module-consistent shapes:
    # batch=2, embed_dim=32, spatial 8x8 (T = 65), num_heads_channels=8 -> 4 heads.
    B, C, Hs, Ws = 2, 32, 8, 8
    num_heads_channels = 8
    n_heads = C // num_heads_channels
    Cout = C                      # output_dim defaults to embed_dim
    S = Hs * Ws
    T = S + 1

    key = jax.random.PRNGKey(0)
    ks = jax.random.split(key, 6)
    x = jax.random.normal(ks[0], (B, C, Hs, Ws), dtype=jnp.float32)
    pos_emb = jax.random.normal(ks[1], (C, T), dtype=jnp.float32) / math.sqrt(C)
    w_qkv = jax.random.normal(ks[2], (3 * C, C), dtype=jnp.float32) / math.sqrt(C)
    b_qkv = 0.1 * jax.random.normal(ks[3], (3 * C,), dtype=jnp.float32)
    w_c = jax.random.normal(ks[4], (Cout, C), dtype=jnp.float32) / math.sqrt(C)
    b_c = 0.1 * jax.random.normal(ks[5], (Cout,), dtype=jnp.float32)

    out = attention_pool_2d(x, pos_emb, w_qkv, b_qkv, w_c, b_c, n_heads)
    out = jax.block_until_ready(out)

    ref = _reference_attention_pool(x, pos_emb, w_qkv, b_qkv, w_c, b_c, n_heads)
    assert out.shape == (B, Cout)
    # Tolerance leaves room for the approx (EUP) reciprocal in the softmax
    # denominator and f32 re-association in the fused AV+c_proj contraction.
    assert jnp.allclose(out, ref, atol=1e-3, rtol=1e-3), float(
        jnp.max(jnp.abs(out - ref)))

    print("KERNEL_OK")
</pallas_src>

<mosaic_0001>
module attributes {stable_mosaic.version = 11 : i64} {
  func.func @_attn_pool_kernel(%arg0: i32, %arg1: memref<1x32x65xf32, #tpu.memory_space<vmem>>, %arg2: memref<96x32xf32, #tpu.memory_space<vmem>>, %arg3: memref<96x1xf32, #tpu.memory_space<vmem>>, %arg4: memref<32x32xf32, #tpu.memory_space<vmem>>, %arg5: memref<32x1xf32, #tpu.memory_space<vmem>>, %arg6: memref<4x32xf32, #tpu.memory_space<vmem>>, %arg7: memref<32x4xf32, #tpu.memory_space<vmem>>, %arg8: memref<1x32x1xf32, #tpu.memory_space<vmem>>) attributes {dimension_semantics = [#tpu.dimension_semantics<parallel>], iteration_bounds = array<i64: 2>, scalar_prefetch = 0 : i64, scratch_operands = 0 : i64, tpu.core_type = #tpu.core_type<tc>, window_params = [{transform_indices = @transform_0, window_bounds = array<i64: 1, 32, 65>}, {pipeline_mode = #tpu.pipeline_mode<synchronous>, transform_indices = @transform_1, window_bounds = array<i64: 96, 32>}, {pipeline_mode = #tpu.pipeline_mode<synchronous>, transform_indices = @transform_2, window_bounds = array<i64: 96, 1>}, {pipeline_mode = #tpu.pipeline_mode<synchronous>, transform_indices = @transform_3, window_bounds = array<i64: 32, 32>}, {pipeline_mode = #tpu.pipeline_mode<synchronous>, transform_indices = @transform_4, window_bounds = array<i64: 32, 1>}, {pipeline_mode = #tpu.pipeline_mode<synchronous>, transform_indices = @transform_5, window_bounds = array<i64: 4, 32>}, {pipeline_mode = #tpu.pipeline_mode<synchronous>, transform_indices = @transform_6, window_bounds = array<i64: 32, 4>}, {transform_indices = @transform_7, window_bounds = array<i64: 1, 32, 1>}]} {
    %c0 = arith.constant 0 : index
    %c0_0 = arith.constant 0 : index
    %c0_1 = arith.constant 0 : index
    %0 = vector.load %arg1[%c0, %c0_0, %c0_1] : memref<1x32x65xf32, #tpu.memory_space<vmem>>, vector<1x32x65xf32>
    %1 = vector.shape_cast %0 : vector<1x32x65xf32> to vector<32x65xf32>
    %c0_2 = arith.constant 0 : index
    %c0_3 = arith.constant 0 : index
    %2 = vector.load %arg2[%c0_2, %c0_3] : memref<96x32xf32, #tpu.memory_space<vmem>>, vector<96x32xf32>
    %cst = arith.constant dense<0.000000e+00> : vector<96x65xf32>
    %3 = tpu.matmul %2, %1, %cst {dimension_numbers = #tpu.dot_dimension_numbers<[1], [0], [0], [1], [0, 0, 1, 1], [], []>} : vector<96x32xf32>, vector<32x65xf32>, vector<96x65xf32> -> vector<96x65xf32>
    %c0_4 = arith.constant 0 : index
    %c0_5 = arith.constant 0 : index
    %4 = vector.load %arg3[%c0_4, %c0_5] : memref<96x1xf32, #tpu.memory_space<vmem>>, vector<96x1xf32>
    %5 = vector.broadcast %4 : vector<96x1xf32> to vector<96x65xf32>
    %6 = arith.addf %3, %5 : vector<96x65xf32>
    %7 = vector.extract_strided_slice %6 {offsets = [0, 0], sizes = [32, 65], strides = [1, 1]} : vector<96x65xf32> to vector<32x65xf32>
    %8 = vector.extract_strided_slice %6 {offsets = [32, 0], sizes = [32, 65], strides = [1, 1]} : vector<96x65xf32> to vector<32x65xf32>
    %9 = vector.extract_strided_slice %6 {offsets = [64, 0], sizes = [32, 65], strides = [1, 1]} : vector<96x65xf32> to vector<32x65xf32>
    %10 = vector.extract_strided_slice %7 {offsets = [0, 0], sizes = [32, 1], strides = [1, 1]} : vector<32x65xf32> to vector<32x1xf32>
    %11 = vector.broadcast %10 : vector<32x1xf32> to vector<32x65xf32>
    %12 = arith.mulf %11, %8 : vector<32x65xf32>
    %c0_6 = arith.constant 0 : index
    %c0_7 = arith.constant 0 : index
    %13 = vector.load %arg6[%c0_6, %c0_7] : memref<4x32xf32, #tpu.memory_space<vmem>>, vector<4x32xf32>
    %cst_8 = arith.constant dense<0.000000e+00> : vector<4x65xf32>
    %14 = tpu.matmul %13, %12, %cst_8 {dimension_numbers = #tpu.dot_dimension_numbers<[1], [0], [0], [1], [0, 0, 1, 1], [], []>} : vector<4x32xf32>, vector<32x65xf32>, vector<4x65xf32> -> vector<4x65xf32>
    %cst_9 = arith.constant 0.353553385 : f32
    %15 = vector.broadcast %cst_9 : f32 to vector<4x65xf32>
    %16 = arith.mulf %14, %15 : vector<4x65xf32>
    %cst_10 = arith.constant dense<0xFF800000> : vector<4xf32>
    %17 = vector.multi_reduction <maximumf>, %16, %cst_10 [1] : vector<4x65xf32> to vector<4xf32>
    %18 = vector.shape_cast %17 : vector<4xf32> to vector<4x1xf32>
    %19 = vector.broadcast %18 : vector<4x1xf32> to vector<4x65xf32>
    %20 = arith.subf %16, %19 : vector<4x65xf32>
    %21 = math.exp %20 : vector<4x65xf32>
    %cst_11 = arith.constant dense<0.000000e+00> : vector<4xf32>
    %22 = vector.multi_reduction <add>, %21, %cst_11 [1] : vector<4x65xf32> to vector<4xf32>
    %23 = vector.shape_cast %22 : vector<4xf32> to vector<4x1xf32>
    %24 = tpu.reciprocal %23 {approx = true} : vector<4x1xf32> -> vector<4x1xf32>
    %25 = vector.broadcast %24 : vector<4x1xf32> to vector<4x65xf32>
    %26 = arith.mulf %21, %25 : vector<4x65xf32>
    %c0_12 = arith.constant 0 : index
    %c0_13 = arith.constant 0 : index
    %27 = vector.load %arg7[%c0_12, %c0_13] : memref<32x4xf32, #tpu.memory_space<vmem>>, vector<32x4xf32>
    %cst_14 = arith.constant dense<0.000000e+00> : vector<32x65xf32>
    %28 = tpu.matmul %27, %26, %cst_14 {dimension_numbers = #tpu.dot_dimension_numbers<[1], [0], [0], [1], [0, 0, 1, 1], [], []>} : vector<32x4xf32>, vector<4x65xf32>, vector<32x65xf32> -> vector<32x65xf32>
    %29 = arith.mulf %28, %9 : vector<32x65xf32>
    %c0_15 = arith.constant 0 : index
    %c0_16 = arith.constant 0 : index
    %30 = vector.load %arg4[%c0_15, %c0_16] : memref<32x32xf32, #tpu.memory_space<vmem>>, vector<32x32xf32>
    %cst_17 = arith.constant dense<0.000000e+00> : vector<32x65xf32>
    %31 = tpu.matmul %30, %29, %cst_17 {dimension_numbers = #tpu.dot_dimension_numbers<[1], [0], [0], [1], [0, 0, 1, 1], [], []>} : vector<32x32xf32>, vector<32x65xf32>, vector<32x65xf32> -> vector<32x65xf32>
    %cst_18 = arith.constant dense<0.000000e+00> : vector<32xf32>
    %32 = vector.multi_reduction <add>, %31, %cst_18 [1] : vector<32x65xf32> to vector<32xf32>
    %33 = vector.shape_cast %32 : vector<32xf32> to vector<32x1xf32>
    %c0_19 = arith.constant 0 : index
    %c0_20 = arith.constant 0 : index
    %34 = vector.load %arg5[%c0_19, %c0_20] : memref<32x1xf32, #tpu.memory_space<vmem>>, vector<32x1xf32>
    %35 = arith.addf %33, %34 : vector<32x1xf32>
    %c0_21 = arith.constant 0 : index
    %c0_22 = arith.constant 0 : index
    %c0_23 = arith.constant 0 : index
    %36 = vector.load %arg8[%c0_21, %c0_22, %c0_23] : memref<1x32x1xf32, #tpu.memory_space<vmem>>, vector<1x32x1xf32>
    %37 = vector.shape_cast %36 : vector<1x32x1xf32> to vector<32x1xf32>
    %38 = vector.shape_cast %35 : vector<32x1xf32> to vector<1x32x1xf32>
    tpu.vector_store %arg8[%c0_21, %c0_22, %c0_23], %38 {strides = array<i32>} : memref<1x32x1xf32, #tpu.memory_space<vmem>>, vector<1x32x1xf32>,
    return
  }
  func.func @transform_0(%arg0: i32) -> (i32, i32, i32) {
    %c0_i32 = arith.constant 0 : i32
    %c0_i32_0 = arith.constant 0 : i32
    %c0_i32_1 = arith.constant 0 : i32
    return %arg0, %c0_i32, %c0_i32_0 : i32, i32, i32
  }
  func.func @transform_1(%arg0: i32) -> (i32, i32) {
    %c0_i32 = arith.constant 0 : i32
    %c0_i32_0 = arith.constant 0 : i32
    %c0_i32_1 = arith.constant 0 : i32
    return %c0_i32, %c0_i32_0 : i32, i32
  }
  func.func @transform_2(%arg0: i32) -> (i32, i32) {
    %c0_i32 = arith.constant 0 : i32
    %c0_i32_0 = arith.constant 0 : i32
    %c0_i32_1 = arith.constant 0 : i32
    return %c0_i32, %c0_i32_0 : i32, i32
  }
  func.func @transform_3(%arg0: i32) -> (i32, i32) {
    %c0_i32 = arith.constant 0 : i32
    %c0_i32_0 = arith.constant 0 : i32
    %c0_i32_1 = arith.constant 0 : i32
    return %c0_i32, %c0_i32_0 : i32, i32
  }
  func.func @transform_4(%arg0: i32) -> (i32, i32) {
    %c0_i32 = arith.constant 0 : i32
    %c0_i32_0 = arith.constant 0 : i32
    %c0_i32_1 = arith.constant 0 : i32
    return %c0_i32, %c0_i32_0 : i32, i32
  }
  func.func @transform_5(%arg0: i32) -> (i32, i32) {
    %c0_i32 = arith.constant 0 : i32
    %c0_i32_0 = arith.constant 0 : i32
    %c0_i32_1 = arith.constant 0 : i32
    return %c0_i32, %c0_i32_0 : i32, i32
  }
  func.func @transform_6(%arg0: i32) -> (i32, i32) {
    %c0_i32 = arith.constant 0 : i32
    %c0_i32_0 = arith.constant 0 : i32
    %c0_i32_1 = arith.constant 0 : i32
    return %c0_i32, %c0_i32_0 : i32, i32
  }
  func.func @transform_7(%arg0: i32) -> (i32, i32, i32) {
    %c0_i32 = arith.constant 0 : i32
    %c0_i32_0 = arith.constant 0 : i32
    %c0_i32_1 = arith.constant 0 : i32
    return %arg0, %c0_i32, %c0_i32_0 : i32, i32, i32
  }
}

</mosaic_0001>

<llo_original>
// kernel: tpu_custom_call.1
$region0: #{tpu_custom_call.1}
  #allocation0 [shape = 'u32[]', space=smem, size = 0x4, offset = 0x4, fixed_abs, tag = 'smem constant byte address 0x4 - core index']
  #allocation1 [shape = 'u32[144,128]{1,0:T(1,128)}', space=vmem, size = 0x12000, scoped, tag = 'internal scratch']
  %s0 = inlined_call_operand.vmem [shape: f32[2,32,65], index: 0, kind: input, shape index: {}]
  %s1 = inlined_call_operand.vmem [shape: f32[96,32], index: 1, kind: input, shape index: {}]
  %s2 = inlined_call_operand.vmem [shape: f32[96,1], index: 2, kind: input, shape index: {}]
  %s3 = inlined_call_operand.vmem [shape: f32[32,32], index: 3, kind: input, shape index: {}]
  %s4 = inlined_call_operand.vmem [shape: f32[32,1], index: 4, kind: input, shape index: {}]
  %s5 = inlined_call_operand.vmem [shape: f32[4,32], index: 5, kind: input, shape index: {}]
  %s6 = inlined_call_operand.vmem [shape: f32[32,4], index: 6, kind: input, shape index: {}]
  %s7 = inlined_call_operand.vmem [shape: f32[2,32,1], index: 7, kind: output, shape index: {}]
  %s8 = sld [smem:[#allocation0]]
  $region61: #{tpu_custom_call.1} parent=0
    _
  %s10 = ssub.s32 1, %s8
  %s11 = scalar_select 0, %s10, %s8
  loop: start=0, step=1, limit=4
  $region2: #{tpu_custom_call.1} parent=0 // loop_pre_header
    _
  $region3: #{tpu_custom_call.1} parent=0 // loop_header
    %s13 = sphi 0, %s17
    %p14 = scmp.ge.s32.totalorder %s13, 4
    %s23 = sphi 0, %s25
    %s26 = sphi 0, %s23
    %s27 = sphi 0, %s26
    %s43 = sphi 0, %s27
    %s47 = sphi 0, %s47
    %s49 = sphi 0, %s47
    %s50 = sphi 0, %s49
    %s64 = sphi 0, %s50
    %s68 = sphi 0, %s68
    %s70 = sphi 0, %s68
    %s71 = sphi 0, %s70
    %s85 = sphi 0, %s71
    %s89 = sphi 0, %s89
    %s91 = sphi 0, %s89
    %s92 = sphi 0, %s91
    %s106 = sphi 0, %s92
    %s110 = sphi 0, %s110
    %s112 = sphi 0, %s110
    %s113 = sphi 0, %s112
    %s127 = sphi 0, %s113
    %s131 = sphi 0, %s131
    %s133 = sphi 0, %s131
    %s134 = sphi 0, %s133
    %s148 = sphi 0, %s134
    %s152 = sphi 0, %s152
    %s154 = sphi 0, %s152
    %s155 = sphi 0, %s154
    %s169 = sphi 0, %s155
    %s175 = sphi 0, %s177
    %s178 = sphi 0, %s175
    %s179 = sphi 0, %s178
    %s195 = sphi 0, %s179
  $region4: #{tpu_custom_call.1} parent=0 // loop_header_branch
    %16 = sbr.rel (%p14) target = $region8
  $region5: #{tpu_custom_call.1} parent=0 // loop_body
    %s18 = ssub.s32 %s13, 1
    %s19 = ssub.s32 %s13, 2
    %s20 = sadd.s32 %s13, 1
    %s21 = ssub.s32 %s13, %s20
    %p22 = scmp.eq.s32.totalorder %s21, 0
    %s24 = sadd.s32 %s23, 1
    %s25 = scalar_select %p22, %s23, %s24
    %p28 = pneg %p22
    %p29 = scmp.eq.s32.totalorder %s13, 1
    %p30 = por %p28, %p29
    %p31 = scmp.ne.s32.totalorder %s23, %s26
    %p32 = scmp.eq.s32.totalorder %s13, 0
    %p33 = por %p31, %p32
    %p34 = scmp.ne.s32.totalorder %s23, %s26
    %p35 = scmp.eq.s32.totalorder %s18, 1
    %p36 = por %p34, %p35
    %p37 = scmp.ne.s32.totalorder %s26, %s27
    %p38 = scmp.eq.s32.totalorder %s18, 0
    %p39 = por %p37, %p38
    %p40 = scmp.ne.s32.totalorder %s26, %s27
    %p41 = scmp.eq.s32.totalorder %s19, 1
    %p42 = por %p40, %p41
    %p44 = scmp.ne.s32.totalorder %s27, %s43
    %p45 = scmp.eq.s32.totalorder %s19, 0
    %p46 = por %p44, %p45
    %s48 = sadd.s32 %s47, 1
    %p51 = scmp.eq.s32.totalorder %s13, 1
    %p52 = scmp.ne.s32.totalorder %s47, %s49
    %p53 = scmp.eq.s32.totalorder %s13, 0
    %p54 = por %p52, %p53
    %p55 = scmp.ne.s32.totalorder %s47, %s49
    %p56 = scmp.eq.s32.totalorder %s18, 1
    %p57 = por %p55, %p56
    %p58 = scmp.ne.s32.totalorder %s49, %s50
    %p59 = scmp.eq.s32.totalorder %s18, 0
    %p60 = por %p58, %p59
    %p61 = scmp.ne.s32.totalorder %s49, %s50
    %p62 = scmp.eq.s32.totalorder %s19, 1
    %p63 = por %p61, %p62
    %p65 = scmp.ne.s32.totalorder %s50, %s64
    %p66 = scmp.eq.s32.totalorder %s19, 0
    %p67 = por %p65, %p66
    %s69 = sadd.s32 %s68, 1
    %p72 = scmp.eq.s32.totalorder %s13, 1
    %p73 = scmp.ne.s32.totalorder %s68, %s70
    %p74 = scmp.eq.s32.totalorder %s13, 0
    %p75 = por %p73, %p74
    %p76 = scmp.ne.s32.totalorder %s68, %s70
    %p77 = scmp.eq.s32.totalorder %s18, 1
    %p78 = por %p76, %p77
    %p79 = scmp.ne.s32.totalorder %s70, %s71
    %p80 = scmp.eq.s32.totalorder %s18, 0
    %p81 = por %p79, %p80
    %p82 = scmp.ne.s32.totalorder %s70, %s71
    %p83 = scmp.eq.s32.totalorder %s19, 1
    %p84 = por %p82, %p83
    %p86 = scmp.ne.s32.totalorder %s71, %s85
    %p87 = scmp.eq.s32.totalorder %s19, 0
    %p88 = por %p86, %p87
    %s90 = sadd.s32 %s89, 1
    %p93 = scmp.eq.s32.totalorder %s13, 1
    %p94 = scmp.ne.s32.totalorder %s89, %s91
    %p95 = scmp.eq.s32.totalorder %s13, 0
    %p96 = por %p94, %p95
    %p97 = scmp.ne.s32.totalorder %s89, %s91
    %p98 = scmp.eq.s32.totalorder %s18, 1
    %p99 = por %p97, %p98
    %p100 = scmp.ne.s32.totalorder %s91, %s92
    %p101 = scmp.eq.s32.totalorder %s18, 0
    %p102 = por %p100, %p101
    %p103 = scmp.ne.s32.totalorder %s91, %s92
    %p104 = scmp.eq.s32.totalorder %s19, 1
    %p105 = por %p103, %p104
    %p107 = scmp.ne.s32.totalorder %s92, %s106
    %p108 = scmp.eq.s32.totalorder %s19, 0
    %p109 = por %p107, %p108
    %s111 = sadd.s32 %s110, 1
    %p114 = scmp.eq.s32.totalorder %s13, 1
    %p115 = scmp.ne.s32.totalorder %s110, %s112
    %p116 = scmp.eq.s32.totalorder %s13, 0
    %p117 = por %p115, %p116
    %p118 = scmp.ne.s32.totalorder %s110, %s112
    %p119 = scmp.eq.s32.totalorder %s18, 1
    %p120 = por %p118, %p119
    %p121 = scmp.ne.s32.totalorder %s112, %s113
    %p122 = scmp.eq.s32.totalorder %s18, 0
    %p123 = por %p121, %p122
    %p124 = scmp.ne.s32.totalorder %s112, %s113
    %p125 = scmp.eq.s32.totalorder %s19, 1
    %p126 = por %p124, %p125
    %p128 = scmp.ne.s32.totalorder %s113, %s127
    %p129 = scmp.eq.s32.totalorder %s19, 0
    %p130 = por %p128, %p129
    %s132 = sadd.s32 %s131, 1
    %p135 = scmp.eq.s32.totalorder %s13, 1
    %p136 = scmp.ne.s32.totalorder %s131, %s133
    %p137 = scmp.eq.s32.totalorder %s13, 0
    %p138 = por %p136, %p137
    %p139 = scmp.ne.s32.totalorder %s131, %s133
    %p140 = scmp.eq.s32.totalorder %s18, 1
    %p141 = por %p139, %p140
    %p142 = scmp.ne.s32.totalorder %s133, %s134
    %p143 = scmp.eq.s32.totalorder %s18, 0
    %p144 = por %p142, %p143
    %p145 = scmp.ne.s32.totalorder %s133, %s134
    %p146 = scmp.eq.s32.totalorder %s19, 1
    %p147 = por %p145, %p146
    %p149 = scmp.ne.s32.totalorder %s134, %s148
    %p150 = scmp.eq.s32.totalorder %s19, 0
    %p151 = por %p149, %p150
    %s153 = sadd.s32 %s152, 1
    %p156 = scmp.eq.s32.totalorder %s13, 1
    %p157 = scmp.ne.s32.totalorder %s152, %s154
    %p158 = scmp.eq.s32.totalorder %s13, 0
    %p159 = por %p157, %p158
    %p160 = scmp.ne.s32.totalorder %s152, %s154
    %p161 = scmp.eq.s32.totalorder %s18, 1
    %p162 = por %p160, %p161
    %p163 = scmp.ne.s32.totalorder %s154, %s155
    %p164 = scmp.eq.s32.totalorder %s18, 0
    %p165 = por %p163, %p164
    %p166 = scmp.ne.s32.totalorder %s154, %s155
    %p167 = scmp.eq.s32.totalorder %s19, 1
    %p168 = por %p166, %p167
    %p170 = scmp.ne.s32.totalorder %s155, %s169
    %p171 = scmp.eq.s32.totalorder %s19, 0
    %p172 = por %p170, %p171
    %s173 = ssub.s32 %s13, %s20
    %p174 = scmp.eq.s32.totalorder %s173, 0
    %s176 = sadd.s32 %s175, 1
    %s177 = scalar_select %p174, %s175, %s176
    %p180 = pneg %p174
    %p181 = scmp.eq.s32.totalorder %s13, 1
    %p182 = por %p180, %p181
    %p183 = scmp.ne.s32.totalorder %s175, %s178
    %p184 = scmp.eq.s32.totalorder %s13, 0
    %p185 = por %p183, %p184
    %p186 = scmp.ne.s32.totalorder %s175, %s178
    %p187 = scmp.eq.s32.totalorder %s18, 1
    %p188 = por %p186, %p187
    %p189 = scmp.ne.s32.totalorder %s178, %s179
    %p190 = scmp.eq.s32.totalorder %s18, 0
    %p191 = por %p189, %p190
    %p192 = scmp.ne.s32.totalorder %s178, %s179
    %p193 = scmp.eq.s32.totalorder %s19, 1
    %p194 = por %p192, %p193
    %p196 = scmp.ne.s32.totalorder %s179, %s195
    %p197 = scmp.eq.s32.totalorder %s19, 0
    %p198 = por %p196, %p197
    %p199 = scmp.le.s32.totalorder 1, %s13
    %p200 = scmp.lt.s32.totalorder %s13, 3
    %p201 = pnand %p199, %p200
    %p202 = pneg %p201
    // Predicated region
    $region9: #{tpu_custom_call.1} parent=5 // pred_check
      _
    $region10: #{tpu_custom_call.1} parent=5 // pred_check_branch
      %204 = sbr.rel (%p201) target = $region12
    $region11: #{tpu_custom_call.1} parent=5 // pred_region
      %s205 = ssub.s32 %s13, 1
      // Predicated region
      $region13: #{tpu_custom_call.1} parent=11 // pred_check
        %p206 = pneg %p60
      $region14: #{tpu_custom_call.1} parent=11 // pred_check_branch
        %208 = sbr.rel (%p206) target = $region16
      $region15: #{tpu_custom_call.1} parent=11 // pred_region
        _
      $region16: #{tpu_custom_call.1} parent=11 // pred_fallthru
        _
      // Predicated region
      $region17: #{tpu_custom_call.1} parent=11 // pred_check
        %p209 = pneg %p81
      $region18: #{tpu_custom_call.1} parent=11 // pred_check_branch
        %211 = sbr.rel (%p209) target = $region20
      $region19: #{tpu_custom_call.1} parent=11 // pred_region
        _
      $region20: #{tpu_custom_call.1} parent=11 // pred_fallthru
        _
      // Predicated region
      $region21: #{tpu_custom_call.1} parent=11 // pred_check
        %p212 = pneg %p102
      $region22: #{tpu_custom_call.1} parent=11 // pred_check_branch
        %214 = sbr.rel (%p212) target = $region24
      $region23: #{tpu_custom_call.1} parent=11 // pred_region
        _
      $region24: #{tpu_custom_call.1} parent=11 // pred_fallthru
        _
      // Predicated region
      $region25: #{tpu_custom_call.1} parent=11 // pred_check
        %p215 = pneg %p123
      $region26: #{tpu_custom_call.1} parent=11 // pred_check_branch
        %217 = sbr.rel (%p215) target = $region28
      $region27: #{tpu_custom_call.1} parent=11 // pred_region
        _
      $region28: #{tpu_custom_call.1} parent=11 // pred_fallthru
        _
      // Predicated region
      $region29: #{tpu_custom_call.1} parent=11 // pred_check
        %p218 = pneg %p144
      $region30: #{tpu_custom_call.1} parent=11 // pred_check_branch
        %220 = sbr.rel (%p218) target = $region32
      $region31: #{tpu_custom_call.1} parent=11 // pred_region
        _
      $region32: #{tpu_custom_call.1} parent=11 // pred_fallthru
        _
      // Predicated region
      $region33: #{tpu_custom_call.1} parent=11 // pred_check
        %p221 = pneg %p165
      $region34: #{tpu_custom_call.1} parent=11 // pred_check_branch
        %223 = sbr.rel (%p221) target = $region36
      $region35: #{tpu_custom_call.1} parent=11 // pred_region
        _
      $region36: #{tpu_custom_call.1} parent=11 // pred_fallthru
        _
    $region12: #{tpu_custom_call.1} parent=5 // pred_fallthru
      _
    %p224 = scmp.lt.s32.totalorder %s13, 2
    // Predicated region
    $region37: #{tpu_custom_call.1} parent=5 // pred_check
      %p225 = pneg %p224
    $region38: #{tpu_custom_call.1} parent=5 // pred_check_branch
      %227 = sbr.rel (%p225) target = $region40
    $region39: #{tpu_custom_call.1} parent=5 // pred_region
      // Predicated region
      $region41: #{tpu_custom_call.1} parent=39 // pred_check
        %p228 = pneg %p33
      $region42: #{tpu_custom_call.1} parent=39 // pred_check_branch
        %230 = sbr.rel (%p228) target = $region44
      $region43: #{tpu_custom_call.1} parent=39 // pred_region
        %p231 = scmp.lt.s32.totalorder %s13, 1
        %s232 = scalar_select %p231, %s13, 1
        %s233 = smul.addr %s232, 4
        %s234 = smul.addr %s233, 8
        %s235 = scalar_lea.vmem %s0, %s234
      $region44: #{tpu_custom_call.1} parent=39 // pred_fallthru
        _
    $region40: #{tpu_custom_call.1} parent=5 // pred_fallthru
      _
    %p236 = scmp.le.s32.totalorder 1, %s13
    %p237 = scmp.lt.s32.totalorder %s13, 3
    %p238 = pnand %p236, %p237
    %p239 = pneg %p238
    // Predicated region
    $region45: #{tpu_custom_call.1} parent=5 // pred_check
      _
    $region46: #{tpu_custom_call.1} parent=5 // pred_check_branch
      %241 = sbr.rel (%p238) target = $region48
    $region47: #{tpu_custom_call.1} parent=5 // pred_region
      %s242 = ssub.s32 %s13, 1
      %p243 = scmp.lt.s32.totalorder %s18, 1
      %s244 = scalar_select %p243, %s18, 1
      %s245 = smul.addr %s244, 4
      %s246 = smul.addr %s245, 8
      %s247 = scalar_lea.vmem %s0, %s246
      %p248 = pneg %p39
      %p249 = pneg %p36
      %p250 = pneg %p60
      %p251 = pneg %p57
      %p252 = pneg %p81
      %p253 = pneg %p78
      %p254 = pneg %p102
      %p255 = pneg %p99
      %p256 = pneg %p123
      %p257 = pneg %p120
      %p258 = pneg %p144
      %p259 = pneg %p141
      %p260 = pneg %p165
      %p261 = pneg %p162
      %p262 = pneg %p191
      %p263 = pneg %p188
      %p264 = scmp.lt.s32.totalorder %s18, 1
      %s265 = scalar_select %p264, %s18, 1
      %s266 = smul.addr %s265, 4
      %s267 = smul.addr %s266, 8
      %s268 = scalar_lea.vmem %s7, %s267
      %p269 = scmp.lt.s32.totalorder %s18, 1
      %s270 = scalar_select %p269, %s18, 1
      %s271 = smul.addr %s270, 4
      %s272 = smul.addr %s271, 8
      %s273 = scalar_lea.vmem %s0, %s272
      %p274 = scmp.lt.s32.totalorder %s18, 1
      %s275 = scalar_select %p274, %s18, 1
      %s276 = smul.addr %s275, 4
      %s277 = smul.addr %s276, 8
      %s278 = scalar_lea.vmem %s7, %s277
      %v279 = vld [vmem:[%s273] sm:$0xff]
      %v280 = vld [vmem:[%s273 + $0x8] sm:$0xff]
      %v281 = vld [vmem:[%s273 + $0x10] sm:$0xff]
      %v282 = vld [vmem:[%s273 + $0x18] sm:$0xff]
      %v283 = vld [vmem:[%s1] sm:$0xff]
      %v284 = vld [vmem:[%s1 + $0x8] sm:$0xff]
      %v285 = vld [vmem:[%s1 + $0x10] sm:$0xff]
      %v286 = vld [vmem:[%s1 + $0x18] sm:$0xff]
      %v287 = vld [vmem:[%s1 + $0x20] sm:$0xff]
      %v288 = vld [vmem:[%s1 + $0x28] sm:$0xff]
      %v289 = vld [vmem:[%s1 + $0x30] sm:$0xff]
      %v290 = vld [vmem:[%s1 + $0x38] sm:$0xff]
      %v291 = vld [vmem:[%s1 + $0x40] sm:$0xff]
      %v292 = vld [vmem:[%s1 + $0x48] sm:$0xff]
      %v293 = vld [vmem:[%s1 + $0x50] sm:$0xff]
      %v294 = vld [vmem:[%s1 + $0x58] sm:$0xff]
      %v295 = vld [vmem:[%s2] sm:$0xff]
      %v296 = vld [vmem:[%s2 + $0x8] sm:$0xff]
      %v297 = vld [vmem:[%s2 + $0x10] sm:$0xff]
      %v298 = vld [vmem:[%s2 + $0x18] sm:$0xff]
      %v299 = vld [vmem:[%s2 + $0x20] sm:$0xff]
      %v300 = vld [vmem:[%s2 + $0x28] sm:$0xff]
      %v301 = vld [vmem:[%s2 + $0x30] sm:$0xff]
      %v302 = vld [vmem:[%s2 + $0x38] sm:$0xff]
      %v303 = vld [vmem:[%s2 + $0x40] sm:$0xff]
      %v304 = vld [vmem:[%s2 + $0x48] sm:$0xff]
      %v305 = vld [vmem:[%s2 + $0x50] sm:$0xff]
      %v306 = vld [vmem:[%s2 + $0x58] sm:$0xff]
      %308 = vset.pattern.permute.xlu0 0
      %309 = vperm.xlu0 %308, %v295
      %v310 = vpop.permute.xlu0 %309
      %313 = vset.pattern.permute.xlu0 0
      %314 = vperm.xlu0 %313, %v296
      %v315 = vpop.permute.xlu0 %314
      %318 = vset.pattern.permute.xlu0 0
      %319 = vperm.xlu0 %318, %v297
      %v320 = vpop.permute.xlu0 %319
      %323 = vset.pattern.permute.xlu0 0
      %324 = vperm.xlu0 %323, %v298
      %v325 = vpop.permute.xlu0 %324
      %328 = vset.pattern.permute.xlu0 0
      %329 = vperm.xlu0 %328, %v299
      %v330 = vpop.permute.xlu0 %329
      %333 = vset.pattern.permute.xlu0 0
      %334 = vperm.xlu0 %333, %v300
      %v335 = vpop.permute.xlu0 %334
      %338 = vset.pattern.permute.xlu0 0
      %339 = vperm.xlu0 %338, %v301
      %v340 = vpop.permute.xlu0 %339
      %343 = vset.pattern.permute.xlu0 0
      %344 = vperm.xlu0 %343, %v302
      %v345 = vpop.permute.xlu0 %344
      %348 = vset.pattern.permute.xlu0 0
      %349 = vperm.xlu0 %348, %v303
      %v350 = vpop.permute.xlu0 %349
      %353 = vset.pattern.permute.xlu0 0
      %354 = vperm.xlu0 %353, %v304
      %v355 = vpop.permute.xlu0 %354
      %358 = vset.pattern.permute.xlu0 0
      %359 = vperm.xlu0 %358, %v305
      %v360 = vpop.permute.xlu0 %359
      %363 = vset.pattern.permute.xlu0 0
      %364 = vperm.xlu0 %363, %v306
      %v365 = vpop.permute.xlu0 %364
      %vm367 = vcmask 261120
      %v369 = vsel %vm367, %v283, 0
      %v372 = vsel %vm367, %v284, 0
      %v375 = vsel %vm367, %v285, 0
      %v378 = vsel %vm367, %v286, 0
      %v381 = vsel %vm367, %v287, 0
      %v384 = vsel %vm367, %v288, 0
      %v387 = vsel %vm367, %v289, 0
      %v390 = vsel %vm367, %v290, 0
      %v393 = vsel %vm367, %v291, 0
      %v396 = vsel %vm367, %v292, 0
      %v399 = vsel %vm367, %v293, 0
      %v402 = vsel %vm367, %v294, 0
      %404 = vmatprep.subr.mxu0 0.0
      %405 = vmatpush1.msra.mxu0 %v279
      %406 = vmatprep.subr.mxu0 0.0
      %407 = vmatpush1.msra.mxu0 %v280
      %408 = vmatprep.subr.mxu0 0.0
      %409 = vmatpush1.msra.mxu0 %v281
      %410 = vmatprep.subr.mxu0 0.0
      %411 = vmatpush1.msra.mxu0 %v282
      %412 = vmatprep.subr.mxu0 0.0
      %413 = vmatpush1.msra.mxu0 0.0
      %414 = vmatprep.subr.mxu0 0.0
      %415 = vmatpush1.msra.mxu0 0.0
      %416 = vmatprep.subr.mxu0 0.0
      %417 = vmatpush1.msra.mxu0 0.0
      %418 = vmatprep.subr.mxu0 0.0
      %419 = vmatpush1.msra.mxu0 0.0
      %420 = vmatprep.subr.mxu0 0.0
      %421 = vmatpush1.msra.mxu0 0.0
      %422 = vmatprep.subr.mxu0 0.0
      %423 = vmatpush1.msra.mxu0 0.0
      %424 = vmatprep.subr.mxu0 0.0
      %425 = vmatpush1.msra.mxu0 0.0
      %426 = vmatprep.subr.mxu0 0.0
      %427 = vmatpush1.msra.mxu0 0.0
      %428 = vmatprep.subr.mxu0 0.0
      %429 = vmatpush1.msra.mxu0 0.0
      %430 = vmatprep.subr.mxu0 0.0
      %431 = vmatpush1.msra.mxu0 0.0
      %432 = vmatprep.subr.mxu0 0.0
      %433 = vmatpush1.msra.mxu0 0.0
      %434 = vmatprep.subr.mxu0 0.0
      %435 = vmatpush1.msra.mxu0 0.0
      %436 = vmatprep.subr.mxu0 0.0
      %437 = vmatpush1.msra.mxu0 0.0
      %438 = vmatprep.subr.mxu0 0.0
      %439 = vmatpush1.msra.mxu0 0.0
      %440 = vmatprep.subr.mxu0 0.0
      %441 = vmatpush1.msra.mxu0 0.0
      %442 = vmatprep.subr.mxu0 0.0
      %443 = vmatpush1.msra.mxu0 0.0
      %444 = vmatprep.subr.mxu0 0.0
      %445 = vmatpush1.msra.mxu0 0.0
      %446 = vmatprep.subr.mxu0 0.0
      %447 = vmatpush1.msra.mxu0 0.0
      %448 = vmatprep.subr.mxu0 0.0
      %449 = vmatpush1.msra.mxu0 0.0
      %450 = vmatprep.subr.mxu0 0.0
      %451 = vmatpush1.msra.mxu0 0.0
      %452 = vmatprep.subr.mxu0 0.0
      %453 = vmatpush1.msra.mxu0 0.0
      %454 = vmatprep.subr.mxu0 0.0
      %455 = vmatpush1.msra.mxu0 0.0
      %456 = vmatprep.subr.mxu0 0.0
      %457 = vmatpush1.msra.mxu0 0.0
      %458 = vmatprep.subr.mxu0 0.0
      %459 = vmatpush1.msra.mxu0 0.0
      %460 = vmatprep.subr.mxu0 0.0
      %461 = vmatpush1.msra.mxu0 0.0
      %462 = vmatprep.subr.mxu0 0.0
      %463 = vmatpush1.msra.mxu0 0.0
      %464 = vmatprep.subr.mxu0 0.0
      %465 = vmatpush1.msra.mxu0 0.0
      %466 = vmatprep.subr.mxu0 0.0
      %467 = vmatpush1.msra.mxu0 0.0
      %468 = vmatprep.mubr.f32.mxu0 0.0
      %469 = vmatmul.mubr.f32.gmra.mrb[0].mxu0 %v369
      %v470 = vpop.f32.mrb[0].mxu0
      %v471 = vadd.f32 %v310, %v470
      %v472 = vpop.f32.mrb[0].mxu0
      %473 = vmatprep.mubr.f32.mxu0 0.0
      %474 = vmatmul.mubr.f32.gmra.mrb[0].mxu0 %v372
      %v475 = vpop.f32.mrb[0].mxu0
      %v476 = vadd.f32 %v315, %v475
      %v477 = vpop.f32.mrb[0].mxu0
      %478 = vmatprep.mubr.f32.mxu0 0.0
      %479 = vmatmul.mubr.f32.gmra.mrb[0].mxu0 %v375
      %v480 = vpop.f32.mrb[0].mxu0
      %v481 = vadd.f32 %v320, %v480
      %v482 = vpop.f32.mrb[0].mxu0
      %483 = vmatprep.mubr.f32.mxu0 0.0
      %484 = vmatmul.mubr.f32.gmra.mrb[0].mxu0 %v378
      %v485 = vpop.f32.mrb[0].mxu0
      %v486 = vadd.f32 %v325, %v485
      %v487 = vpop.f32.mrb[0].mxu0
      %488 = vmatprep.mubr.f32.mxu0 0.0
      %489 = vmatmul.mubr.f32.gmra.mrb[0].mxu0 %v381
      %v490 = vpop.f32.mrb[0].mxu0
      %v491 = vadd.f32 %v330, %v490
      %v492 = vpop.f32.mrb[0].mxu0
      %493 = vmatprep.mubr.f32.mxu0 0.0
      %494 = vmatmul.mubr.f32.gmra.mrb[0].mxu0 %v384
      %v495 = vpop.f32.mrb[0].mxu0
      %v496 = vadd.f32 %v335, %v495
      %v497 = vpop.f32.mrb[0].mxu0
      %498 = vmatprep.mubr.f32.mxu0 0.0
      %499 = vmatmul.mubr.f32.gmra.mrb[0].mxu0 %v387
      %v500 = vpop.f32.mrb[0].mxu0
      %v501 = vadd.f32 %v340, %v500
      %v502 = vpop.f32.mrb[0].mxu0
      %503 = vmatprep.mubr.f32.mxu0 0.0
      %504 = vmatmul.mubr.f32.gmra.mrb[0].mxu0 %v390
      %v505 = vpop.f32.mrb[0].mxu0
      %v506 = vadd.f32 %v345, %v505
      %v507 = vpop.f32.mrb[0].mxu0
      %508 = vmatprep.mubr.f32.mxu0 0.0
      %509 = vmatmul.mubr.f32.gmra.mrb[0].mxu0 %v393
      %v510 = vpop.f32.mrb[0].mxu0
      %v511 = vadd.f32 %v350, %v510
      %v512 = vpop.f32.mrb[0].mxu0
      %513 = vmatprep.mubr.f32.mxu0 0.0
      %514 = vmatmul.mubr.f32.gmra.mrb[0].mxu0 %v396
      %v515 = vpop.f32.mrb[0].mxu0
      %v516 = vadd.f32 %v355, %v515
      %v517 = vpop.f32.mrb[0].mxu0
      %518 = vmatprep.mubr.f32.mxu0 0.0
      %519 = vmatmul.mubr.f32.gmra.mrb[0].mxu0 %v399
      %v520 = vpop.f32.mrb[0].mxu0
      %v521 = vadd.f32 %v360, %v520
      %v522 = vpop.f32.mrb[0].mxu0
      %523 = vmatprep.mubr.f32.mxu0 0.0
      %524 = vmatmul.mubr.f32.gmra.mrb[0].mxu0 %v402
      %v525 = vpop.f32.mrb[0].mxu0
      %v526 = vadd.f32 %v365, %v525
      %v527 = vpop.f32.mrb[0].mxu0
      %528 = vdwg.mxu0
      %530 = vset.pattern.permute.xlu0 0
      %531 = vperm.xlu0 %530, %v471
      %v532 = vpop.permute.xlu0 %531
      %535 = vset.pattern.permute.xlu0 0
      %536 = vperm.xlu0 %535, %v476
      %v537 = vpop.permute.xlu0 %536
      %540 = vset.pattern.permute.xlu0 0
      %541 = vperm.xlu0 %540, %v481
      %v542 = vpop.permute.xlu0 %541
      %545 = vset.pattern.permute.xlu0 0
      %546 = vperm.xlu0 %545, %v486
      %v547 = vpop.permute.xlu0 %546
      %v549 = vmul.f32 %v532, %v491
      %v550 = vmul.f32 %v537, %v496
      %v551 = vmul.f32 %v542, %v501
      %v552 = vmul.f32 %v547, %v506
      %v553 = vld [vmem:[%s5] sm:$0xf]
      %v555 = vsel %vm367, %v553, 0
      %557 = vmatprep.subr.mxu0 0.0
      %558 = vmatpush1.msra.mxu0 %v549
      %559 = vmatprep.subr.mxu0 0.0
      %560 = vmatpush1.msra.mxu0 %v550
      %561 = vmatprep.subr.mxu0 0.0
      %562 = vmatpush1.msra.mxu0 %v551
      %563 = vmatprep.subr.mxu0 0.0
      %564 = vmatpush1.msra.mxu0 %v552
      %565 = vmatprep.subr.mxu0 0.0
      %566 = vmatpush1.msra.mxu0 0.0
      %567 = vmatprep.subr.mxu0 0.0
      %568 = vmatpush1.msra.mxu0 0.0
      %569 = vmatprep.subr.mxu0 0.0
      %570 = vmatpush1.msra.mxu0 0.0
      %571 = vmatprep.subr.mxu0 0.0
      %572 = vmatpush1.msra.mxu0 0.0
      %573 = vmatprep.subr.mxu0 0.0
      %574 = vmatpush1.msra.mxu0 0.0
      %575 = vmatprep.subr.mxu0 0.0
      %576 = vmatpush1.msra.mxu0 0.0
      %577 = vmatprep.subr.mxu0 0.0
      %578 = vmatpush1.msra.mxu0 0.0
      %579 = vmatprep.subr.mxu0 0.0
      %580 = vmatpush1.msra.mxu0 0.0
      %581 = vmatprep.subr.mxu0 0.0
      %582 = vmatpush1.msra.mxu0 0.0
      %583 = vmatprep.subr.mxu0 0.0
      %584 = vmatpush1.msra.mxu0 0.0
      %585 = vmatprep.subr.mxu0 0.0
      %586 = vmatpush1.msra.mxu0 0.0
      %587 = vmatprep.subr.mxu0 0.0
      %588 = vmatpush1.msra.mxu0 0.0
      %589 = vmatprep.subr.mxu0 0.0
      %590 = vmatpush1.msra.mxu0 0.0
      %591 = vmatprep.subr.mxu0 0.0
      %592 = vmatpush1.msra.mxu0 0.0
      %593 = vmatprep.subr.mxu0 0.0
      %594 = vmatpush1.msra.mxu0 0.0
      %595 = vmatprep.subr.mxu0 0.0
      %596 = vmatpush1.msra.mxu0 0.0
      %597 = vmatprep.subr.mxu0 0.0
      %598 = vmatpush1.msra.mxu0 0.0
      %599 = vmatprep.subr.mxu0 0.0
      %600 = vmatpush1.msra.mxu0 0.0
      %601 = vmatprep.subr.mxu0 0.0
      %602 = vmatpush1.msra.mxu0 0.0
      %603 = vmatprep.subr.mxu0 0.0
      %604 = vmatpush1.msra.mxu0 0.0
      %605 = vmatprep.subr.mxu0 0.0
      %606 = vmatpush1.msra.mxu0 0.0
      %607 = vmatprep.subr.mxu0 0.0
      %608 = vmatpush1.msra.mxu0 0.0
      %609 = vmatprep.subr.mxu0 0.0
      %610 = vmatpush1.msra.mxu0 0.0
      %611 = vmatprep.subr.mxu0 0.0
      %612 = vmatpush1.msra.mxu0 0.0
      %613 = vmatprep.subr.mxu0 0.0
      %614 = vmatpush1.msra.mxu0 0.0
      %615 = vmatprep.subr.mxu0 0.0
      %616 = vmatpush1.msra.mxu0 0.0
      %617 = vmatprep.subr.mxu0 0.0
      %618 = vmatpush1.msra.mxu0 0.0
      %619 = vmatprep.subr.mxu0 0.0
      %620 = vmatpush1.msra.mxu0 0.0
      %621 = vmatprep.mubr.f32.mxu0 0.0
      %622 = vmatmul.mubr.f32.gmra.mrb[0].mxu0 %v555
      %v623 = vpop.f32.mrb[0].mxu0
      %v624 = vadd.f32 0.0, %v623
      %v625 = vpop.f32.mrb[0].mxu0
      %626 = vdwg.mxu0
      %v627 = vmul.f32 %v624, 0.35355338
      %vm628 = vcmask 527360
      %v629 = vsel %vm628, %v627, -inf
      %630 = vmax.xlane.f32.xlu0 %v629
      %v631 = vpop.xlane.xlu0 %630
      %v632 = vsub.f32 %v627, %v631
      %v633 = vmul.f32 %v632, 1.442695
      %v634 = vpow.pop %v633
      %v635 = vsel %vm628, %v634, 0.0
      %636 = vadd.xlane.f32.xlu0 %v635
      %v637 = vpop.xlane.xlu0 %636
      %v638 = vrcp.pop %v637
      %v639 = vmul.f32 %v634, %v638
      %v640 = vld [vmem:[%s6] sm:$0xff]
      %v641 = vld [vmem:[%s6 + $0x8] sm:$0xff]
      %v642 = vld [vmem:[%s6 + $0x10] sm:$0xff]
      %v643 = vld [vmem:[%s6 + $0x18] sm:$0xff]
      %vm644 = vcmask 31744
      %v646 = vsel %vm644, %v640, 0
      %v649 = vsel %vm644, %v641, 0
      %v652 = vsel %vm644, %v642, 0
      %v655 = vsel %vm644, %v643, 0
      %vm657 = vcmask 1043456
      %v659 = vsel %vm657, %v639, 0
      %661 = vmatprep.subr.mxu0 0.0
      %662 = vmatpush1.msra.mxu0 %v659
      %663 = vmatprep.subr.mxu0 0.0
      %664 = vmatpush1.msra.mxu0 0.0
      %665 = vmatprep.subr.mxu0 0.0
      %666 = vmatpush1.msra.mxu0 0.0
      %667 = vmatprep.subr.mxu0 0.0
      %668 = vmatpush1.msra.mxu0 0.0
      %669 = vmatprep.subr.mxu0 0.0
      %670 = vmatpush1.msra.mxu0 0.0
      %671 = vmatprep.subr.mxu0 0.0
      %672 = vmatpush1.msra.mxu0 0.0
      %673 = vmatprep.subr.mxu0 0.0
      %674 = vmatpush1.msra.mxu0 0.0
      %675 = vmatprep.subr.mxu0 0.0
      %676 = vmatpush1.msra.mxu0 0.0
      %677 = vmatprep.subr.mxu0 0.0
      %678 = vmatpush1.msra.mxu0 0.0
      %679 = vmatprep.subr.mxu0 0.0
      %680 = vmatpush1.msra.mxu0 0.0
      %681 = vmatprep.subr.mxu0 0.0
      %682 = vmatpush1.msra.mxu0 0.0
      %683 = vmatprep.subr.mxu0 0.0
      %684 = vmatpush1.msra.mxu0 0.0
      %685 = vmatprep.subr.mxu0 0.0
      %686 = vmatpush1.msra.mxu0 0.0
      %687 = vmatprep.subr.mxu0 0.0
      %688 = vmatpush1.msra.mxu0 0.0
      %689 = vmatprep.subr.mxu0 0.0
      %690 = vmatpush1.msra.mxu0 0.0
      %691 = vmatprep.subr.mxu0 0.0
      %692 = vmatpush1.msra.mxu0 0.0
      %693 = vmatprep.subr.mxu0 0.0
      %694 = vmatpush1.msra.mxu0 0.0
      %695 = vmatprep.subr.mxu0 0.0
      %696 = vmatpush1.msra.mxu0 0.0
      %697 = vmatprep.subr.mxu0 0.0
      %698 = vmatpush1.msra.mxu0 0.0
      %699 = vmatprep.subr.mxu0 0.0
      %700 = vmatpush1.msra.mxu0 0.0
      %701 = vmatprep.subr.mxu0 0.0
      %702 = vmatpush1.msra.mxu0 0.0
      %703 = vmatprep.subr.mxu0 0.0
      %704 = vmatpush1.msra.mxu0 0.0
      %705 = vmatprep.subr.mxu0 0.0
      %706 = vmatpush1.msra.mxu0 0.0
      %707 = vmatprep.subr.mxu0 0.0
      %708 = vmatpush1.msra.mxu0 0.0
      %709 = vmatprep.subr.mxu0 0.0
      %710 = vmatpush1.msra.mxu0 0.0
      %711 = vmatprep.subr.mxu0 0.0
      %712 = vmatpush1.msra.mxu0 0.0
      %713 = vmatprep.subr.mxu0 0.0
      %714 = vmatpush1.msra.mxu0 0.0
      %715 = vmatprep.subr.mxu0 0.0
      %716 = vmatpush1.msra.mxu0 0.0
      %717 = vmatprep.subr.mxu0 0.0
      %718 = vmatpush1.msra.mxu0 0.0
      %719 = vmatprep.subr.mxu0 0.0
      %720 = vmatpush1.msra.mxu0 0.0
      %721 = vmatprep.subr.mxu0 0.0
      %722 = vmatpush1.msra.mxu0 0.0
      %723 = vmatprep.subr.mxu0 0.0
      %724 = vmatpush1.msra.mxu0 0.0
      %725 = vmatprep.mubr.f32.mxu0 0.0
      %726 = vmatmul.mubr.f32.gmra.mrb[0].mxu0 %v646
      %v727 = vpop.f32.mrb[0].mxu0
      %v728 = vadd.f32 0.0, %v727
      %v729 = vpop.f32.mrb[0].mxu0
      %730 = vmatprep.mubr.f32.mxu0 0.0
      %731 = vmatmul.mubr.f32.gmra.mrb[0].mxu0 %v649
      %v732 = vpop.f32.mrb[0].mxu0
      %v733 = vadd.f32 0.0, %v732
      %v734 = vpop.f32.mrb[0].mxu0
      %735 = vmatprep.mubr.f32.mxu0 0.0
      %736 = vmatmul.mubr.f32.gmra.mrb[0].mxu0 %v652
      %v737 = vpop.f32.mrb[0].mxu0
      %v738 = vadd.f32 0.0, %v737
      %v739 = vpop.f32.mrb[0].mxu0
      %740 = vmatprep.mubr.f32.mxu0 0.0
      %741 = vmatmul.mubr.f32.gmra.mrb[0].mxu0 %v655
      %v742 = vpop.f32.mrb[0].mxu0
      %v743 = vadd.f32 0.0, %v742
      %v744 = vpop.f32.mrb[0].mxu0
      %745 = vdwg.mxu0
      %v746 = vmul.f32 %v728, %v511
      %v747 = vmul.f32 %v733, %v516
      %v748 = vmul.f32 %v738, %v521
      %v749 = vmul.f32 %v743, %v526
      %v750 = vld [vmem:[%s3] sm:$0xff]
      %v751 = vld [vmem:[%s3 + $0x8] sm:$0xff]
      %v752 = vld [vmem:[%s3 + $0x10] sm:$0xff]
      %v753 = vld [vmem:[%s3 + $0x18] sm:$0xff]
      %v755 = vsel %vm367, %v750, 0
      %v758 = vsel %vm367, %v751, 0
      %v761 = vsel %vm367, %v752, 0
      %v764 = vsel %vm367, %v753, 0
      %766 = vmatprep.subr.mxu0 0.0
      %767 = vmatpush1.msra.mxu0 %v746
      %768 = vmatprep.subr.mxu0 0.0
      %769 = vmatpush1.msra.mxu0 %v747
      %770 = vmatprep.subr.mxu0 0.0
      %771 = vmatpush1.msra.mxu0 %v748
      %772 = vmatprep.subr.mxu0 0.0
      %773 = vmatpush1.msra.mxu0 %v749
      %774 = vmatprep.subr.mxu0 0.0
      %775 = vmatpush1.msra.mxu0 0.0
      %776 = vmatprep.subr.mxu0 0.0
      %777 = vmatpush1.msra.mxu0 0.0
      %778 = vmatprep.subr.mxu0 0.0
      %779 = vmatpush1.msra.mxu0 0.0
      %780 = vmatprep.subr.mxu0 0.0
      %781 = vmatpush1.msra.mxu0 0.0
      %782 = vmatprep.subr.mxu0 0.0
      %783 = vmatpush1.msra.mxu0 0.0
      %784 = vmatprep.subr.mxu0 0.0
      %785 = vmatpush1.msra.mxu0 0.0
      %786 = vmatprep.subr.mxu0 0.0
      %787 = vmatpush1.msra.mxu0 0.0
      %788 = vmatprep.subr.mxu0 0.0
      %789 = vmatpush1.msra.mxu0 0.0
      %790 = vmatprep.subr.mxu0 0.0
      %791 = vmatpush1.msra.mxu0 0.0
      %792 = vmatprep.subr.mxu0 0.0
      %793 = vmatpush1.msra.mxu0 0.0
      %794 = vmatprep.subr.mxu0 0.0
      %795 = vmatpush1.msra.mxu0 0.0
      %796 = vmatprep.subr.mxu0 0.0
      %797 = vmatpush1.msra.mxu0 0.0
      %798 = vmatprep.subr.mxu0 0.0
      %799 = vmatpush1.msra.mxu0 0.0
      %800 = vmatprep.subr.mxu0 0.0
      %801 = vmatpush1.msra.mxu0 0.0
      %802 = vmatprep.subr.mxu0 0.0
      %803 = vmatpush1.msra.mxu0 0.0
      %804 = vmatprep.subr.mxu0 0.0
      %805 = vmatpush1.msra.mxu0 0.0
      %806 = vmatprep.subr.mxu0 0.0
      %807 = vmatpush1.msra.mxu0 0.0
      %808 = vmatprep.subr.mxu0 0.0
      %809 = vmatpush1.msra.mxu0 0.0
      %810 = vmatprep.subr.mxu0 0.0
      %811 = vmatpush1.msra.mxu0 0.0
      %812 = vmatprep.subr.mxu0 0.0
      %813 = vmatpush1.msra.mxu0 0.0
      %814 = vmatprep.subr.mxu0 0.0
      %815 = vmatpush1.msra.mxu0 0.0
      %816 = vmatprep.subr.mxu0 0.0
      %817 = vmatpush1.msra.mxu0 0.0
      %818 = vmatprep.subr.mxu0 0.0
      %819 = vmatpush1.msra.mxu0 0.0
      %820 = vmatprep.subr.mxu0 0.0
      %821 = vmatpush1.msra.mxu0 0.0
      %822 = vmatprep.subr.mxu0 0.0
      %823 = vmatpush1.msra.mxu0 0.0
      %824 = vmatprep.subr.mxu0 0.0
      %825 = vmatpush1.msra.mxu0 0.0
      %826 = vmatprep.subr.mxu0 0.0
      %827 = vmatpush1.msra.mxu0 0.0
      %828 = vmatprep.subr.mxu0 0.0
      %829 = vmatpush1.msra.mxu0 0.0
      %830 = vmatprep.mubr.f32.mxu0 0.0
      %831 = vmatmul.mubr.f32.gmra.mrb[0].mxu0 %v755
      %v832 = vpop.f32.mrb[0].mxu0
      %v833 = vadd.f32 0.0, %v832
      %v834 = vpop.f32.mrb[0].mxu0
      %835 = vmatprep.mubr.f32.mxu0 0.0
      %836 = vmatmul.mubr.f32.gmra.mrb[0].mxu0 %v758
      %v837 = vpop.f32.mrb[0].mxu0
      %v838 = vadd.f32 0.0, %v837
      %v839 = vpop.f32.mrb[0].mxu0
      %840 = vmatprep.mubr.f32.mxu0 0.0
      %841 = vmatmul.mubr.f32.gmra.mrb[0].mxu0 %v761
      %v842 = vpop.f32.mrb[0].mxu0
      %v843 = vadd.f32 0.0, %v842
      %v844 = vpop.f32.mrb[0].mxu0
      %845 = vmatprep.mubr.f32.mxu0 0.0
      %846 = vmatmul.mubr.f32.gmra.mrb[0].mxu0 %v764
      %v847 = vpop.f32.mrb[0].mxu0
      %v848 = vadd.f32 0.0, %v847
      %v849 = vpop.f32.mrb[0].mxu0
      %850 = vdwg.mxu0
      %vm851 = vcmask 531456
      %v852 = vsel %vm851, %v833, 0.0
      %853 = vadd.xlane.f32.xlu0 %v852
      %v854 = vpop.xlane.xlu0 %853
      %v855 = vsel %vm851, %v838, 0.0
      %856 = vadd.xlane.f32.xlu0 %v855
      %v857 = vpop.xlane.xlu0 %856
      %v858 = vsel %vm851, %v843, 0.0
      %859 = vadd.xlane.f32.xlu0 %v858
      %v860 = vpop.xlane.xlu0 %859
      %v861 = vsel %vm851, %v848, 0.0
      %862 = vadd.xlane.f32.xlu0 %v861
      %v863 = vpop.xlane.xlu0 %862
      %v864 = vld [vmem:[%s4] sm:$0xff]
      %v865 = vld [vmem:[%s4 + $0x8] sm:$0xff]
      %v866 = vld [vmem:[%s4 + $0x10] sm:$0xff]
      %v867 = vld [vmem:[%s4 + $0x18] sm:$0xff]
      %v868 = vadd.f32 %v854, %v864
      %v869 = vadd.f32 %v857, %v865
      %v870 = vadd.f32 %v860, %v866
      %v871 = vadd.f32 %v863, %v867
      %vm872 = vcmask 7168
      %873 = vst.msk [vmem:[%s278] sm:$0xff] %vm872, %v868
      %874 = vst.msk [vmem:[%s278 + $0x8] sm:$0xff] %vm872, %v869
      %875 = vst.msk [vmem:[%s278 + $0x10] sm:$0xff] %vm872, %v870
      %876 = vst.msk [vmem:[%s278 + $0x18] sm:$0xff] %vm872, %v871
      %p877 = scmp.lt.s32.totalorder %s18, 1
      %s878 = scalar_select %p877, %s18, 1
      %s879 = smul.addr %s878, 4
      %s880 = smul.addr %s879, 8
      %s881 = scalar_lea.vmem %s7, %s880
      // Predicated region
      $region49: #{tpu_custom_call.1} parent=47 // pred_check
        %p882 = pneg %p188
      $region50: #{tpu_custom_call.1} parent=47 // pred_check_branch
        %884 = sbr.rel (%p882) target = $region52
      $region51: #{tpu_custom_call.1} parent=47 // pred_region
        _
      $region52: #{tpu_custom_call.1} parent=47 // pred_fallthru
        _
    $region48: #{tpu_custom_call.1} parent=5 // pred_fallthru
      _
    %p885 = scmp.le.s32.totalorder 2, %s13
    // Predicated region
    $region53: #{tpu_custom_call.1} parent=5 // pred_check
      %p886 = pneg %p885
    $region54: #{tpu_custom_call.1} parent=5 // pred_check_branch
      %888 = sbr.rel (%p886) target = $region56
    $region55: #{tpu_custom_call.1} parent=5 // pred_region
      %s889 = ssub.s32 %s13, 2
      // Predicated region
      $region57: #{tpu_custom_call.1} parent=55 // pred_check
        %p890 = pneg %p194
      $region58: #{tpu_custom_call.1} parent=55 // pred_check_branch
        %892 = sbr.rel (%p890) target = $region60
      $region59: #{tpu_custom_call.1} parent=55 // pred_region
        %p893 = scmp.lt.s32.totalorder %s19, 1
        %s894 = scalar_select %p893, %s19, 1
        %s895 = smul.addr %s894, 4
        %s896 = smul.addr %s895, 8
        %s897 = scalar_lea.vmem %s7, %s896
      $region60: #{tpu_custom_call.1} parent=55 // pred_fallthru
        _
    $region56: #{tpu_custom_call.1} parent=5 // pred_fallthru
      _
  $region6: #{tpu_custom_call.1} parent=0 // loop_footer
    %s17 = sadd.s32 1, %s13
  $region7: #{tpu_custom_call.1} parent=0 // loop_footer_branch
    %12 = sbr.rel target = $region3
  $region8: #{tpu_custom_call.1} parent=0 // loop_exit
    _

</llo_original>
